<compile_context>
chip_gen: v6e
topology: v6e:2x2x1
jax: 0.10.0
libtpu: 0.0.40
codegen_flags: <defaults>
</compile_context>

<pallas_src>
import functools
import inspect

import jax
import jax.numpy as jnp
from jax.experimental import pallas as pl
from jax.experimental.pallas import tpu as pltpu


def _round_up(x, m):
    return ((x + m - 1) // m) * m


def _supports_pipeline_mode():
    try:
        return "pipeline_mode" in inspect.signature(pl.BlockSpec).parameters
    except (TypeError, ValueError):
        return False


_HAS_PIPELINE_MODE = _supports_pipeline_mode()


def _vmem_capacity_bytes():
    # Capacity heuristic only (used for tiling decisions); never masks kernel
    # trace/compile errors.
    try:
        return int(pltpu.get_tpu_info().vmem_capacity_bytes)
    except Exception:
        return 64 * 1024 * 1024  # conservative (v7x per-TC) fallback


# --------------------------------------------------------------------------
# Kernels
# --------------------------------------------------------------------------

def _ffn_kernel_resident(x_ref, gamma_ref, beta_ref, w1_ref, b1_ref, w2_ref,
                         b2_ref, o_ref, *, eps, mxu_dtype):
    """Whole W1/W2 resident in VMEM: LN -> matmul -> ReLU -> matmul in one shot."""
    x = x_ref[...].astype(jnp.float32)
    mean = jnp.mean(x, axis=-1, keepdims=True)
    var = jnp.mean(jnp.square(x - mean), axis=-1, keepdims=True)
    inv = jax.lax.rsqrt(var + eps)                     # EUP; cheaper than sqrt+div
    xn = ((x - mean) * inv * gamma_ref[...] + beta_ref[...]).astype(mxu_dtype)

    h = jnp.dot(xn, w1_ref[...], preferred_element_type=jnp.float32)
    h = jnp.maximum(h + b1_ref[...], 0.0)
    out = jnp.dot(h.astype(mxu_dtype), w2_ref[...],
                  preferred_element_type=jnp.float32)
    o_ref[...] = (out + b2_ref[...]).astype(o_ref.dtype)


def _ffn_kernel_tiled(x_ref, gamma_ref, beta_ref, w1_ref, b1_ref, w2_ref,
                      b2_ref, o_ref, xn_ref, *, eps):
    """W1 column-blocks / W2 row-blocks streamed over the trailing grid axis.

    The f32 output block is revisited across `it` (constant block index), so it
    stays VMEM-resident and serves directly as the accumulator (seeded with b2).
    """
    it = pl.program_id(1)

    @pl.when(it == 0)
    def _():
        x = x_ref[...].astype(jnp.float32)
        mean = jnp.mean(x, axis=-1, keepdims=True)
        var = jnp.mean(jnp.square(x - mean), axis=-1, keepdims=True)
        inv = jax.lax.rsqrt(var + eps)
        xn = (x - mean) * inv * gamma_ref[...] + beta_ref[...]
        xn_ref[...] = xn.astype(xn_ref.dtype)
        o_ref[...] = jnp.broadcast_to(b2_ref[...], o_ref.shape).astype(o_ref.dtype)

    h = jnp.dot(xn_ref[...], w1_ref[...], preferred_element_type=jnp.float32)
    h = jnp.maximum(h + b1_ref[...], 0.0)
    o_ref[...] += jnp.dot(h.astype(xn_ref.dtype), w2_ref[...],
                          preferred_element_type=jnp.float32).astype(o_ref.dtype)


# --------------------------------------------------------------------------
# pallas_call builder
# --------------------------------------------------------------------------

def _build_and_run(x2d, gamma2d, beta2d, w1c, b1_2d, w2c, b2_2d, *,
                   row_tile, i_tile, eps, vmem_limit):
    Mp, H = x2d.shape
    I = w1c.shape[1]
    n_row = Mp // row_tile
    n_it = I // i_tile
    w_dtype = w1c.dtype
    w_el = jnp.dtype(w_dtype).itemsize

    def const_spec(shape, index_map):
        # Block index never changes -> fetched once; single-buffer to save VMEM.
        if _HAS_PIPELINE_MODE:
            return pl.BlockSpec(shape, index_map, pipeline_mode=pl.Buffered(1))
        return pl.BlockSpec(shape, index_map)

    def stream_spec(shape, index_map):
        # Streamed weight blocks: deeper buffering hides the large DMAs.
        if _HAS_PIPELINE_MODE:
            return pl.BlockSpec(shape, index_map, pipeline_mode=pl.Buffered(3))
        return pl.BlockSpec(shape, index_map)

    flops = 4 * Mp * H * I
    weight_hbm = 2 * H * I * w_el * (n_row if n_it > 1 else 1)   # re-streamed per row tile
    bytes_accessed = int(2 * Mp * H * 4 + weight_hbm + (I + 3 * H) * 4)
    cost = pl.CostEstimate(flops=flops, transcendentals=Mp,
                           bytes_accessed=bytes_accessed)

    if n_it == 1:
        grid = (n_row,)
        in_specs = [
            pl.BlockSpec((row_tile, H), lambda i: (i, 0)),   # x rows
            const_spec((1, H), lambda i: (0, 0)),            # gamma
            const_spec((1, H), lambda i: (0, 0)),            # beta
            const_spec((H, I), lambda i: (0, 0)),            # W1^T (resident)
            const_spec((1, I), lambda i: (0, 0)),            # b1
            const_spec((I, H), lambda i: (0, 0)),            # W2^T (resident)
            const_spec((1, H), lambda i: (0, 0)),            # b2
        ]
        out_specs = pl.BlockSpec((row_tile, H), lambda i: (i, 0))
        scratch_shapes = []
        kernel = functools.partial(_ffn_kernel_resident, eps=eps,
                                   mxu_dtype=w_dtype)
        dims = ("parallel",)
    else:
        grid = (n_row, n_it)
        in_specs = [
            pl.BlockSpec((row_tile, H), lambda i, it: (i, 0)),   # x rows
            const_spec((1, H), lambda i, it: (0, 0)),            # gamma
            const_spec((1, H), lambda i, it: (0, 0)),            # beta
            stream_spec((H, i_tile), lambda i, it: (0, it)),     # W1^T col-block
            stream_spec((1, i_tile), lambda i, it: (0, it)),     # b1 block
            stream_spec((i_tile, H), lambda i, it: (it, 0)),     # W2^T row-block
            const_spec((1, H), lambda i, it: (0, 0)),            # b2
        ]
        out_specs = pl.BlockSpec((row_tile, H), lambda i, it: (i, 0))
        scratch_shapes = [pltpu.VMEM((row_tile, H), w_dtype)]    # normalized activations
        kernel = functools.partial(_ffn_kernel_tiled, eps=eps)
        dims = ("parallel", "arbitrary")

    return pl.pallas_call(
        kernel,
        out_shape=jax.ShapeDtypeStruct((Mp, H), x2d.dtype),
        grid_spec=pltpu.PrefetchScalarGridSpec(
            num_scalar_prefetch=0,
            grid=grid,
            in_specs=in_specs,
            out_specs=out_specs,
            scratch_shapes=scratch_shapes,
        ),
        compiler_params=pltpu.CompilerParams(
            dimension_semantics=dims,
            vmem_limit_bytes=vmem_limit),
        cost_estimate=cost,
    )(x2d, gamma2d, beta2d, w1c, b1_2d, w2c, b2_2d)


# --------------------------------------------------------------------------
# Host wrapper: tiling / VMEM policy
# --------------------------------------------------------------------------

def feedforward_layer(x, gamma, beta, w1_t, b1, w2_t, b2, *,
                      row_tile=None, i_tile=None, use_bf16=True, eps=1e-6):
    """x: (B, S, H) float32.  w1_t: (H, I) = W1.T,  w2_t: (I, H) = W2.T."""
    B, S, H = x.shape
    I = w1_t.shape[1]
    M = B * S

    w_dtype = jnp.bfloat16 if use_bf16 else jnp.float32
    w_el = jnp.dtype(w_dtype).itemsize

    vmem_cap = _vmem_capacity_bytes()
    headroom = 8 * 1024 * 1024

    # Generation-aware resident-weight budget: keep W1/W2 resident whenever
    # they fit (fetched once -> kernel stays MXU-bound); otherwise stream.
    if vmem_cap >= 96 * 1024 * 1024:          # v5e / v6e: 128 MiB VMEM
        weight_budget = 88 * 1024 * 1024
    else:                                     # v7x: 64 MiB VMEM per TensorCore
        weight_budget = 30 * 1024 * 1024

    resident_bufs = 1 if _HAS_PIPELINE_MODE else 2   # Buffered(1) vs default 2
    stream_bufs = 3 if _HAS_PIPELINE_MODE else 2     # Buffered(3) vs default 2

    # ---- intermediate-dim tiling -------------------------------------------
    if i_tile is None:
        if resident_bufs * 2 * H * I * w_el <= weight_budget or I <= 128:
            i_tile = I
        else:
            i_tile = 128
            for cand in range((I // 128) * 128, 127, -128):
                if I % cand == 0 and stream_bufs * 2 * H * cand * w_el <= weight_budget:
                    i_tile = cand
                    break
            if I % i_tile != 0:               # no clean divisor: fall back to resident
                i_tile = I
    assert I % i_tile == 0, "I must be a multiple of i_tile"
    n_it = I // i_tile

    # ---- row tiling ---------------------------------------------------------
    # MXU-friendly granularity (256 on big problems, 128 suffices on v5e's MXU,
    # >=16 so the bf16 xn scratch packs sublanes cleanly).
    if M >= 512:
        granule = 256
    elif M >= 128:
        granule = 128
    elif M >= 16:
        granule = 16
    else:
        granule = 8

    if row_tile is None:
        if n_it == 1:
            row_tile = 256
        else:
            # Streaming weights: bigger row tiles raise FLOPs per streamed byte.
            row_tile = 768 if vmem_cap >= 96 * 1024 * 1024 else 384
    row_tile = max(granule, _round_up(min(row_tile, M), granule))

    # ---- VMEM accounting (includes the h intermediate) ----------------------
    if n_it == 1:
        weight_bytes = resident_bufs * (2 * H * I + I + H) * w_el
    else:
        weight_bytes = stream_bufs * (2 * H * i_tile + i_tile) * w_el

    def _act_bytes(rt):
        return (4 * rt * H * 4                          # x + out tiles, double-buffered
                + (rt * H * w_el if n_it > 1 else 0)    # xn scratch (streamed case only)
                + rt * i_tile * (4 + w_el)              # h (f32) + its MXU-dtype cast copy
                + 8 * (3 * H + i_tile))                 # gamma/beta/b2 (+b1), small

    # Shrink the row tile until the working set fits under physical VMEM.
    while row_tile > granule and weight_bytes + _act_bytes(row_tile) > vmem_cap - headroom:
        row_tile = max(granule, _round_up(row_tile // 2, granule))

    Mp = _round_up(M, row_tile)
    n_row = Mp // row_tile

    # Megacore (v7x: 2 TensorCores): when weights are resident and only one row
    # tile was produced, split it so the "parallel" axis can actually be sharded.
    if n_it == 1 and n_row == 1 and row_tile > granule:
        row_tile = max(granule, _round_up((M + 1) // 2, granule))
        Mp = _round_up(M, row_tile)
        n_row = Mp // row_tile

    # Scoped VMEM limit: above the 32 MiB default when needed, always capped
    # below physical VMEM (64 MiB/TC on v7x, 128 MiB on v5e/v6e).
    need = weight_bytes + _act_bytes(row_tile)
    vmem_limit = int(min(vmem_cap - headroom,
                         max(32 * 1024 * 1024, int(1.25 * need))))
    vmem_limit = max(vmem_limit, 16 * 1024 * 1024)

    # ---- operand prep -------------------------------------------------------
    x2d = x.reshape(M, H)
    if Mp != M:
        # Padded zero rows give xn = beta (var == 0) and then flow through the
        # matmuls; they only waste a few MXU cycles and are sliced off below.
        x2d = jnp.pad(x2d, ((0, Mp - M), (0, 0)))
    gamma2d = gamma.reshape(1, H).astype(jnp.float32)
    beta2d = beta.reshape(1, H).astype(jnp.float32)
    b1_2d = b1.reshape(1, I).astype(jnp.float32)
    b2_2d = b2.reshape(1, H).astype(jnp.float32)
    # TODO(synk): on v7x an fp8 weight path (bf16 activations) would halve the
    # weight footprint; kept bf16 here for cross-generation accuracy/simplicity.
    w1c = w1_t.astype(w_dtype)
    w2c = w2_t.astype(w_dtype)

    out2d = _build_and_run(x2d, gamma2d, beta2d, w1c, b1_2d, w2c, b2_2d,
                           row_tile=row_tile, i_tile=i_tile, eps=eps,
                           vmem_limit=vmem_limit)
    return out2d[:M].reshape(B, S, H)


# --------------------------------------------------------------------------
# Reference + demo
# --------------------------------------------------------------------------

def init_params(key, hidden_size, intermediate_size):
    """Deterministic synthetic init mirroring the torch module's __init__."""
    k1, k2 = jax.random.split(key)
    # kaiming_normal_ (fan_in mode, relu gain): std = sqrt(2 / fan_in)
    w1 = jax.random.normal(k1, (intermediate_size, hidden_size),
                           jnp.float32) * jnp.sqrt(2.0 / hidden_size)
    w2 = jax.random.normal(k2, (hidden_size, intermediate_size),
                           jnp.float32) * jnp.sqrt(2.0 / intermediate_size)
    b1 = jnp.zeros((intermediate_size,), jnp.float32)
    b2 = jnp.zeros((hidden_size,), jnp.float32)
    gamma = jnp.ones((hidden_size,), jnp.float32)
    beta = jnp.zeros((hidden_size,), jnp.float32)
    # pre-transpose weights so the kernel computes x @ W^T as x @ w_t
    return gamma, beta, w1.T, b1, w2.T, b2


def reference(x, gamma, beta, w1_t, b1, w2_t, b2):
    # Matches the PyTorch module (forward's epsilon default is 1e-6).
    mean = jnp.mean(x, axis=2, keepdims=True)
    var = jnp.mean(jnp.square(x - mean), axis=2, keepdims=True)
    xn = gamma * ((x - mean) / jnp.sqrt(var + 1e-6)) + beta
    h = jnp.maximum(xn @ w1_t + b1, 0.0)
    return h @ w2_t + b2


if __name__ == "__main__":
    B, S, H, I = 2, 8, 256, 512   # module defaults: hidden=256, intermediate=512

    key = jax.random.PRNGKey(0)
    kx, kp = jax.random.split(key)
    x = jax.random.normal(kx, (B, S, H), jnp.float32)
    gamma, beta, w1_t, b1, w2_t, b2 = init_params(kp, H, I)

    out = feedforward_layer(x, gamma, beta, w1_t, b1, w2_t, b2)
    out = jax.block_until_ready(out)

    ref = reference(x, gamma, beta, w1_t, b1, w2_t, b2)
    assert out.shape == (B, S, H)
    # bf16 MXU operands with f32 accumulation -> loosened tolerance vs f32 ref.
    assert jnp.allclose(out, ref, atol=5e-2, rtol=5e-2), (
        "mismatch vs reference: max abs err "
        f"{float(jnp.max(jnp.abs(out - ref)))}")

    print("KERNEL_OK")
</pallas_src>

<mosaic_0001>
module attributes {stable_mosaic.version = 11 : i64} {
  func.func @_ffn_kernel_resident(%arg0: i32, %arg1: memref<16x256xf32, #tpu.memory_space<vmem>>, %arg2: memref<1x256xf32, #tpu.memory_space<vmem>>, %arg3: memref<1x256xf32, #tpu.memory_space<vmem>>, %arg4: memref<256x512xbf16, #tpu.memory_space<vmem>>, %arg5: memref<1x512xf32, #tpu.memory_space<vmem>>, %arg6: memref<512x256xbf16, #tpu.memory_space<vmem>>, %arg7: memref<1x256xf32, #tpu.memory_space<vmem>>, %arg8: memref<16x256xf32, #tpu.memory_space<vmem>>) attributes {dimension_semantics = [#tpu.dimension_semantics<parallel>], iteration_bounds = array<i64: 1>, scalar_prefetch = 0 : i64, scratch_operands = 0 : i64, tpu.core_type = #tpu.core_type<tc>, window_params = [{transform_indices = @transform_0, window_bounds = array<i64: 16, 256>}, {pipeline_mode = #tpu.pipeline_mode<synchronous>, transform_indices = @transform_1, window_bounds = array<i64: 1, 256>}, {pipeline_mode = #tpu.pipeline_mode<synchronous>, transform_indices = @transform_2, window_bounds = array<i64: 1, 256>}, {pipeline_mode = #tpu.pipeline_mode<synchronous>, transform_indices = @transform_3, window_bounds = array<i64: 256, 512>}, {pipeline_mode = #tpu.pipeline_mode<synchronous>, transform_indices = @transform_4, window_bounds = array<i64: 1, 512>}, {pipeline_mode = #tpu.pipeline_mode<synchronous>, transform_indices = @transform_5, window_bounds = array<i64: 512, 256>}, {pipeline_mode = #tpu.pipeline_mode<synchronous>, transform_indices = @transform_6, window_bounds = array<i64: 1, 256>}, {transform_indices = @transform_7, window_bounds = array<i64: 16, 256>}]} {
    %c0 = arith.constant 0 : index
    %c0_0 = arith.constant 0 : index
    %0 = vector.load %arg1[%c0, %c0_0] : memref<16x256xf32, #tpu.memory_space<vmem>>, vector<16x256xf32>
    %cst = arith.constant dense<0.000000e+00> : vector<16xf32>
    %1 = vector.multi_reduction <add>, %0, %cst [1] : vector<16x256xf32> to vector<16xf32>
    %2 = vector.shape_cast %1 : vector<16xf32> to vector<16x1xf32>
    %cst_1 = arith.constant 2.560000e+02 : f32
    %3 = vector.broadcast %cst_1 : f32 to vector<16x1xf32>
    %4 = arith.divf %2, %3 : vector<16x1xf32>
    %5 = vector.broadcast %4 : vector<16x1xf32> to vector<16x256xf32>
    %6 = arith.subf %0, %5 : vector<16x256xf32>
    %7 = arith.mulf %6, %6 : vector<16x256xf32>
    %cst_2 = arith.constant dense<0.000000e+00> : vector<16xf32>
    %8 = vector.multi_reduction <add>, %7, %cst_2 [1] : vector<16x256xf32> to vector<16xf32>
    %9 = vector.shape_cast %8 : vector<16xf32> to vector<16x1xf32>
    %cst_3 = arith.constant 2.560000e+02 : f32
    %10 = vector.broadcast %cst_3 : f32 to vector<16x1xf32>
    %11 = arith.divf %9, %10 : vector<16x1xf32>
    %cst_4 = arith.constant 9.99999997E-7 : f32
    %12 = vector.broadcast %cst_4 : f32 to vector<16x1xf32>
    %13 = arith.addf %11, %12 : vector<16x1xf32>
    %14 = math.rsqrt %13 : vector<16x1xf32>
    %15 = vector.broadcast %4 : vector<16x1xf32> to vector<16x256xf32>
    %16 = arith.subf %0, %15 : vector<16x256xf32>
    %17 = vector.broadcast %14 : vector<16x1xf32> to vector<16x256xf32>
    %18 = arith.mulf %16, %17 : vector<16x256xf32>
    %c0_5 = arith.constant 0 : index
    %c0_6 = arith.constant 0 : index
    %19 = vector.load %arg2[%c0_5, %c0_6] : memref<1x256xf32, #tpu.memory_space<vmem>>, vector<1x256xf32>
    %20 = vector.broadcast %19 : vector<1x256xf32> to vector<16x256xf32>
    %21 = arith.mulf %18, %20 : vector<16x256xf32>
    %c0_7 = arith.constant 0 : index
    %c0_8 = arith.constant 0 : index
    %22 = vector.load %arg3[%c0_7, %c0_8] : memref<1x256xf32, #tpu.memory_space<vmem>>, vector<1x256xf32>
    %23 = vector.broadcast %22 : vector<1x256xf32> to vector<16x256xf32>
    %24 = arith.addf %21, %23 : vector<16x256xf32>
    %25 = arith.truncf %24 : vector<16x256xf32> to vector<16x256xbf16>
    %c0_9 = arith.constant 0 : index
    %c0_10 = arith.constant 0 : index
    %26 = vector.load %arg4[%c0_9, %c0_10] : memref<256x512xbf16, #tpu.memory_space<vmem>>, vector<256x512xbf16>
    %cst_11 = arith.constant dense<0.000000e+00> : vector<16x512xf32>
    %27 = tpu.matmul %25, %26, %cst_11 {dimension_numbers = #tpu.dot_dimension_numbers<[1], [0], [0], [1], [0, 0, 1, 1], [], []>} : vector<16x256xbf16>, vector<256x512xbf16>, vector<16x512xf32> -> vector<16x512xf32>
    %c0_12 = arith.constant 0 : index
    %c0_13 = arith.constant 0 : index
    %28 = vector.load %arg5[%c0_12, %c0_13] : memref<1x512xf32, #tpu.memory_space<vmem>>, vector<1x512xf32>
    %29 = vector.broadcast %28 : vector<1x512xf32> to vector<16x512xf32>
    %30 = arith.addf %27, %29 : vector<16x512xf32>
    %cst_14 = arith.constant 0.000000e+00 : f32
    %31 = vector.broadcast %cst_14 : f32 to vector<16x512xf32>
    %32 = arith.maximumf %30, %31 : vector<16x512xf32>
    %33 = arith.truncf %32 : vector<16x512xf32> to vector<16x512xbf16>
    %c0_15 = arith.constant 0 : index
    %c0_16 = arith.constant 0 : index
    %34 = vector.load %arg6[%c0_15, %c0_16] : memref<512x256xbf16, #tpu.memory_space<vmem>>, vector<512x256xbf16>
    %cst_17 = arith.constant dense<0.000000e+00> : vector<16x256xf32>
    %35 = tpu.matmul %33, %34, %cst_17 {dimension_numbers = #tpu.dot_dimension_numbers<[1], [0], [0], [1], [0, 0, 1, 1], [], []>} : vector<16x512xbf16>, vector<512x256xbf16>, vector<16x256xf32> -> vector<16x256xf32>
    %c0_18 = arith.constant 0 : index
    %c0_19 = arith.constant 0 : index
    %36 = vector.load %arg7[%c0_18, %c0_19] : memref<1x256xf32, #tpu.memory_space<vmem>>, vector<1x256xf32>
    %37 = vector.broadcast %36 : vector<1x256xf32> to vector<16x256xf32>
    %38 = arith.addf %35, %37 : vector<16x256xf32>
    %c0_20 = arith.constant 0 : index
    %c0_21 = arith.constant 0 : index
    %39 = vector.load %arg8[%c0_20, %c0_21] : memref<16x256xf32, #tpu.memory_space<vmem>>, vector<16x256xf32>
    tpu.vector_store %arg8[%c0_20, %c0_21], %38 {strides = array<i32>} : memref<16x256xf32, #tpu.memory_space<vmem>>, vector<16x256xf32>,
    return
  }
  func.func @transform_0(%arg0: i32) -> (i32, i32) {
    %c0_i32 = arith.constant 0 : i32
    %c0_i32_0 = arith.constant 0 : i32
    return %arg0, %c0_i32 : i32, i32
  }
  func.func @transform_1(%arg0: i32) -> (i32, i32) {
    %c0_i32 = arith.constant 0 : i32
    %c0_i32_0 = arith.constant 0 : i32
    %c0_i32_1 = arith.constant 0 : i32
    return %c0_i32, %c0_i32_0 : i32, i32
  }
  func.func @transform_2(%arg0: i32) -> (i32, i32) {
    %c0_i32 = arith.constant 0 : i32
    %c0_i32_0 = arith.constant 0 : i32
    %c0_i32_1 = arith.constant 0 : i32
    return %c0_i32, %c0_i32_0 : i32, i32
  }
  func.func @transform_3(%arg0: i32) -> (i32, i32) {
    %c0_i32 = arith.constant 0 : i32
    %c0_i32_0 = arith.constant 0 : i32
    %c0_i32_1 = arith.constant 0 : i32
    return %c0_i32, %c0_i32_0 : i32, i32
  }
  func.func @transform_4(%arg0: i32) -> (i32, i32) {
    %c0_i32 = arith.constant 0 : i32
    %c0_i32_0 = arith.constant 0 : i32
    %c0_i32_1 = arith.constant 0 : i32
    return %c0_i32, %c0_i32_0 : i32, i32
  }
  func.func @transform_5(%arg0: i32) -> (i32, i32) {
    %c0_i32 = arith.constant 0 : i32
    %c0_i32_0 = arith.constant 0 : i32
    %c0_i32_1 = arith.constant 0 : i32
    return %c0_i32, %c0_i32_0 : i32, i32
  }
  func.func @transform_6(%arg0: i32) -> (i32, i32) {
    %c0_i32 = arith.constant 0 : i32
    %c0_i32_0 = arith.constant 0 : i32
    %c0_i32_1 = arith.constant 0 : i32
    return %c0_i32, %c0_i32_0 : i32, i32
  }
  func.func @transform_7(%arg0: i32) -> (i32, i32) {
    %c0_i32 = arith.constant 0 : i32
    %c0_i32_0 = arith.constant 0 : i32
    return %arg0, %c0_i32 : i32, i32
  }
}

</mosaic_0001>

<llo_original>
// kernel: tpu_custom_call.1
$region0: #{tpu_custom_call.1}
  #allocation0 [shape = 'u32[]', space=smem, size = 0x4, offset = 0x4, fixed_abs, tag = 'smem constant byte address 0x4 - core index']
  #allocation1 [shape = 'u32[144,128]{1,0:T(1,128)}', space=vmem, size = 0x12000, scoped, tag = 'internal scratch']
  %s0 = inlined_call_operand.hbm [shape: f32[16,256], index: 0, kind: input, shape index: {}]
  %s1 = inlined_call_operand.hbm [shape: f32[1,256], index: 1, kind: input, shape index: {}]
  %s2 = inlined_call_operand.vmem [shape: f32[1,256], index: 2, kind: input, shape index: {}]
  %s3 = inlined_call_operand.hbm [shape: bf16[256,512], index: 3, kind: input, shape index: {}]
  %s4 = inlined_call_operand.vmem [shape: f32[1,512], index: 4, kind: input, shape index: {}]
  %s5 = inlined_call_operand.hbm [shape: bf16[512,256], index: 5, kind: input, shape index: {}]
  %s6 = inlined_call_operand.vmem [shape: f32[1,256], index: 6, kind: input, shape index: {}]
  %s7 = inlined_call_operand.hbm [shape: f32[16,256], index: 7, kind: output, shape index: {}]
  %s8 = sld [smem:[#allocation0]]
  $region54: #{tpu_custom_call.1} parent=0
    _
  %s10 = ssub.s32 1, %s8
  %s11 = scalar_select 0, %s10, %s8
  $region1: #{tpu_custom_call.1} parent=0
    #allocation2 [shape = 'u8[16384]{0}', space=vmem, size = 0x4000, scoped, tag = 'input window, operand 0, single buffered']
    #allocation3 [shape = 's32[1]{0}', space=sflag, size = 0x4, scoped, tag = 'scoped memory for tpu_custom_call.1']
    #allocation4 [shape = 's32[1]{0}', space=sflag, size = 0x4, scoped, tag = 'scoped memory for tpu_custom_call.1']
    #allocation5 [shape = 'u8[1024]{0}', space=vmem, size = 0x400, scoped, tag = 'input window, operand 1, single buffered']
    #allocation6 [shape = 's32[1]{0}', space=sflag, size = 0x4, scoped, tag = 'scoped memory for tpu_custom_call.1']
    #allocation7 [shape = 'u8[262144]{0}', space=vmem, size = 0x40000, scoped, tag = 'input window, operand 3, single buffered']
    #allocation8 [shape = 'u8[262144]{0}', space=vmem, size = 0x40000, scoped, tag = 'input window, operand 5, single buffered']
    #allocation9 [shape = 's32[1]{0}', space=sflag, size = 0x4, scoped, tag = 'scoped memory for tpu_custom_call.1']
    #allocation10 [shape = 'u8[16384]{0}', space=vmem, size = 0x4000, scoped, tag = 'output window, operand 0, single buffered']
    %12 = vsyncpa [#allocation3], 0
    %13 = vsyncpa [#allocation6], 0
    %14 = vsyncpa [#allocation9], 0
    %15 = vsyncpa [#allocation4], 0
    // Predicated region
    $region2: #{tpu_custom_call.1} parent=1 // pred_check
      _
    $region3: #{tpu_custom_call.1} parent=1 // pred_check_branch
      %17 = sbr.rel (0) target = $region5
    $region4: #{tpu_custom_call.1} parent=1 // pred_region
      %s19 = ssub.s32 512, 512
      %20 = vsyncadd [#allocation3], %s19
      %s21 = sshll.u32 [#allocation2], 4
      %s22 = int_to_ptr.vmem [resolvable:$true] %s21
      %27 = dma.hbm_to_vmem [thread:$0]  %s0, 512, %s22, [#allocation3], 256, 256, 16
    $region5: #{tpu_custom_call.1} parent=1 // pred_fallthru
      _
    // Predicated region
    $region6: #{tpu_custom_call.1} parent=1 // pred_check
      _
    $region7: #{tpu_custom_call.1} parent=1 // pred_check_branch
      %29 = sbr.rel (0) target = $region9
    $region8: #{tpu_custom_call.1} parent=1 // pred_region
      %s31 = ssub.s32 32, 32
      %32 = vsyncadd [#allocation6], %s31
      %s34 = sshll.u32 [#allocation5], 4
      %s35 = int_to_ptr.vmem [resolvable:$true] %s34
      %37 = dma.hbm_to_vmem [thread:$0]  %s1, 32, %s35, [#allocation6]
    $region9: #{tpu_custom_call.1} parent=1 // pred_fallthru
      _
    // Predicated region
    $region10: #{tpu_custom_call.1} parent=1 // pred_check
      _
    $region11: #{tpu_custom_call.1} parent=1 // pred_check_branch
      %39 = sbr.rel (0) target = $region13
    $region12: #{tpu_custom_call.1} parent=1 // pred_region
      _
    $region13: #{tpu_custom_call.1} parent=1 // pred_fallthru
      _
    // Predicated region
    $region14: #{tpu_custom_call.1} parent=1 // pred_check
      _
    $region15: #{tpu_custom_call.1} parent=1 // pred_check_branch
      %41 = sbr.rel (0) target = $region17
    $region16: #{tpu_custom_call.1} parent=1 // pred_region
      %s43 = ssub.s32 8192, 8192
      %44 = vsyncadd [#allocation6], %s43
      %s45 = sshll.u32 [#allocation7], 4
      %s46 = int_to_ptr.vmem [resolvable:$true] %s45
      %51 = dma.hbm_to_vmem [thread:$0]  %s3, 8192, %s46, [#allocation6], 256, 256, 16
    $region17: #{tpu_custom_call.1} parent=1 // pred_fallthru
      _
    // Predicated region
    $region18: #{tpu_custom_call.1} parent=1 // pred_check
      _
    $region19: #{tpu_custom_call.1} parent=1 // pred_check_branch
      %53 = sbr.rel (0) target = $region21
    $region20: #{tpu_custom_call.1} parent=1 // pred_region
      _
    $region21: #{tpu_custom_call.1} parent=1 // pred_fallthru
      _
    // Predicated region
    $region22: #{tpu_custom_call.1} parent=1 // pred_check
      _
    $region23: #{tpu_custom_call.1} parent=1 // pred_check_branch
      %55 = sbr.rel (0) target = $region25
    $region24: #{tpu_custom_call.1} parent=1 // pred_region
      %s57 = ssub.s32 8192, 8192
      %58 = vsyncadd [#allocation9], %s57
      %s59 = sshll.u32 [#allocation8], 4
      %s60 = int_to_ptr.vmem [resolvable:$true] %s59
      %65 = dma.hbm_to_vmem [thread:$0]  %s5, 8192, %s60, [#allocation9], 128, 128, 8
    $region25: #{tpu_custom_call.1} parent=1 // pred_fallthru
      _
    // Predicated region
    $region26: #{tpu_custom_call.1} parent=1 // pred_check
      _
    $region27: #{tpu_custom_call.1} parent=1 // pred_check_branch
      %67 = sbr.rel (0) target = $region29
    $region28: #{tpu_custom_call.1} parent=1 // pred_region
      _
    $region29: #{tpu_custom_call.1} parent=1 // pred_fallthru
      _
    // Predicated region
    $region30: #{tpu_custom_call.1} parent=1 // pred_check
      _
    $region31: #{tpu_custom_call.1} parent=1 // pred_check_branch
      %69 = sbr.rel (0) target = $region33
    $region32: #{tpu_custom_call.1} parent=1 // pred_region
      %70 = dma.done [#allocation3], 512
    $region33: #{tpu_custom_call.1} parent=1 // pred_fallthru
      _
    // Predicated region
    $region34: #{tpu_custom_call.1} parent=1 // pred_check
      _
    $region35: #{tpu_custom_call.1} parent=1 // pred_check_branch
      %72 = sbr.rel (0) target = $region37
    $region36: #{tpu_custom_call.1} parent=1 // pred_region
      %73 = dma.done [#allocation6], 32
    $region37: #{tpu_custom_call.1} parent=1 // pred_fallthru
      _
    // Predicated region
    $region38: #{tpu_custom_call.1} parent=1 // pred_check
      _
    $region39: #{tpu_custom_call.1} parent=1 // pred_check_branch
      %75 = sbr.rel (0) target = $region41
    $region40: #{tpu_custom_call.1} parent=1 // pred_region
      %76 = dma.done [#allocation6], 8192
    $region41: #{tpu_custom_call.1} parent=1 // pred_fallthru
      _
    // Predicated region
    $region42: #{tpu_custom_call.1} parent=1 // pred_check
      _
    $region43: #{tpu_custom_call.1} parent=1 // pred_check_branch
      %78 = sbr.rel (0) target = $region45
    $region44: #{tpu_custom_call.1} parent=1 // pred_region
      %79 = dma.done [#allocation9], 8192
    $region45: #{tpu_custom_call.1} parent=1 // pred_fallthru
      _
    %v80 = vld [vmem:[#allocation2] sm:$0xff]
    %v81 = vld [vmem:[#allocation2 + $0x8] sm:$0xff]
    %v82 = vld [vmem:[#allocation2 + $0x10] sm:$0xff]
    %v83 = vld [vmem:[#allocation2 + $0x18] sm:$0xff]
    %v84 = vadd.f32 %v80, %v81
    %85 = vadd.xlane.f32.xlu0 %v84
    %v86 = vpop.xlane.xlu0 %85
    %v87 = vadd.f32 %v82, %v83
    %88 = vadd.xlane.f32.xlu0 %v87
    %v89 = vpop.xlane.xlu0 %88
    %v90 = vrcp.pop 256.0
    %v91 = vmul.f32 %v86, %v90
    %v92 = vmul.f32 %v89, %v90
    %v93 = vsub.f32 %v80, %v91
    %v94 = vsub.f32 %v81, %v91
    %v95 = vsub.f32 %v82, %v92
    %v96 = vsub.f32 %v83, %v92
    %v97 = vmul.f32 %v93, %v93
    %v98 = vmul.f32 %v94, %v94
    %v99 = vmul.f32 %v95, %v95
    %v100 = vmul.f32 %v96, %v96
    %v101 = vadd.f32 %v97, %v98
    %102 = vadd.xlane.f32.xlu0 %v101
    %v103 = vpop.xlane.xlu0 %102
    %v104 = vadd.f32 %v99, %v100
    %105 = vadd.xlane.f32.xlu0 %v104
    %v106 = vpop.xlane.xlu0 %105
    %v107 = vmul.f32 %v103, %v90
    %v108 = vmul.f32 %v106, %v90
    %v109 = vadd.f32 %v107, 1e-06
    %v110 = vadd.f32 %v108, 1e-06
    %v111 = vrsqrt.pop %v109
    %v112 = vrsqrt.pop %v110
    %v113 = vmul.f32 %v93, %v111
    %v114 = vmul.f32 %v94, %v111
    %v115 = vmul.f32 %v95, %v112
    %v116 = vmul.f32 %v96, %v112
    %v117 = vld [vmem:[#allocation5] sm:$0x3]
    %v119 = vlaneseq
    %v120 = vshrl.u32 %v119, 7
    %v121 = vsub.s32 0, %v120
    %v122 = vrot.slane %v117, %v121
    %v123 = vlaneseq
    %v124 = vshrl.u32 %v123, 7
    %v125 = vsub.s32 1, %v124
    %v126 = vrot.slane %v117, %v125
    %v129 = vmul.f32 %v113, %v122
    %v130 = vmul.f32 %v114, %v126
    %v131 = vmul.f32 %v115, %v122
    %v132 = vmul.f32 %v116, %v126
    %v133 = vld [vmem:[%s2] sm:$0x3]
    %v135 = vlaneseq
    %v136 = vshrl.u32 %v135, 7
    %v137 = vsub.s32 0, %v136
    %v138 = vrot.slane %v133, %v137
    %v139 = vlaneseq
    %v140 = vshrl.u32 %v139, 7
    %v141 = vsub.s32 1, %v140
    %v142 = vrot.slane %v133, %v141
    %v145 = vadd.f32 %v129, %v138
    %v146 = vadd.f32 %v130, %v142
    %v147 = vadd.f32 %v131, %v138
    %v148 = vadd.f32 %v132, %v142
    %v149 = vpack.c.bf16 %v147, %v145
    %v150 = vpack.c.bf16 %v148, %v146
    %v151 = vld [vmem:[#allocation7] sm:$0xff]
    %v152 = vld [vmem:[#allocation7 + $0x8] sm:$0xff]
    %v153 = vld [vmem:[#allocation7 + $0x10] sm:$0xff]
    %v154 = vld [vmem:[#allocation7 + $0x18] sm:$0xff]
    %v155 = vld [vmem:[#allocation7 + $0x20] sm:$0xff]
    %v156 = vld [vmem:[#allocation7 + $0x28] sm:$0xff]
    %v157 = vld [vmem:[#allocation7 + $0x30] sm:$0xff]
    %v158 = vld [vmem:[#allocation7 + $0x38] sm:$0xff]
    %v159 = vld [vmem:[#allocation7 + $0x40] sm:$0xff]
    %v160 = vld [vmem:[#allocation7 + $0x48] sm:$0xff]
    %v161 = vld [vmem:[#allocation7 + $0x50] sm:$0xff]
    %v162 = vld [vmem:[#allocation7 + $0x58] sm:$0xff]
    %v163 = vld [vmem:[#allocation7 + $0x60] sm:$0xff]
    %v164 = vld [vmem:[#allocation7 + $0x68] sm:$0xff]
    %v165 = vld [vmem:[#allocation7 + $0x70] sm:$0xff]
    %v166 = vld [vmem:[#allocation7 + $0x78] sm:$0xff]
    %v167 = vld [vmem:[#allocation7 + $0x80] sm:$0xff]
    %v168 = vld [vmem:[#allocation7 + $0x88] sm:$0xff]
    %v169 = vld [vmem:[#allocation7 + $0x90] sm:$0xff]
    %v170 = vld [vmem:[#allocation7 + $0x98] sm:$0xff]
    %v171 = vld [vmem:[#allocation7 + $0xa0] sm:$0xff]
    %v172 = vld [vmem:[#allocation7 + $0xa8] sm:$0xff]
    %v173 = vld [vmem:[#allocation7 + $0xb0] sm:$0xff]
    %v174 = vld [vmem:[#allocation7 + $0xb8] sm:$0xff]
    %v175 = vld [vmem:[#allocation7 + $0xc0] sm:$0xff]
    %v176 = vld [vmem:[#allocation7 + $0xc8] sm:$0xff]
    %v177 = vld [vmem:[#allocation7 + $0xd0] sm:$0xff]
    %v178 = vld [vmem:[#allocation7 + $0xd8] sm:$0xff]
    %v179 = vld [vmem:[#allocation7 + $0xe0] sm:$0xff]
    %v180 = vld [vmem:[#allocation7 + $0xe8] sm:$0xff]
    %v181 = vld [vmem:[#allocation7 + $0xf0] sm:$0xff]
    %v182 = vld [vmem:[#allocation7 + $0xf8] sm:$0xff]
    %v183 = vld [vmem:[#allocation7 + $0x100] sm:$0xff]
    %v184 = vld [vmem:[#allocation7 + $0x108] sm:$0xff]
    %v185 = vld [vmem:[#allocation7 + $0x110] sm:$0xff]
    %v186 = vld [vmem:[#allocation7 + $0x118] sm:$0xff]
    %v187 = vld [vmem:[#allocation7 + $0x120] sm:$0xff]
    %v188 = vld [vmem:[#allocation7 + $0x128] sm:$0xff]
    %v189 = vld [vmem:[#allocation7 + $0x130] sm:$0xff]
    %v190 = vld [vmem:[#allocation7 + $0x138] sm:$0xff]
    %v191 = vld [vmem:[#allocation7 + $0x140] sm:$0xff]
    %v192 = vld [vmem:[#allocation7 + $0x148] sm:$0xff]
    %v193 = vld [vmem:[#allocation7 + $0x150] sm:$0xff]
    %v194 = vld [vmem:[#allocation7 + $0x158] sm:$0xff]
    %v195 = vld [vmem:[#allocation7 + $0x160] sm:$0xff]
    %v196 = vld [vmem:[#allocation7 + $0x168] sm:$0xff]
    %v197 = vld [vmem:[#allocation7 + $0x170] sm:$0xff]
    %v198 = vld [vmem:[#allocation7 + $0x178] sm:$0xff]
    %v199 = vld [vmem:[#allocation7 + $0x180] sm:$0xff]
    %v200 = vld [vmem:[#allocation7 + $0x188] sm:$0xff]
    %v201 = vld [vmem:[#allocation7 + $0x190] sm:$0xff]
    %v202 = vld [vmem:[#allocation7 + $0x198] sm:$0xff]
    %v203 = vld [vmem:[#allocation7 + $0x1a0] sm:$0xff]
    %v204 = vld [vmem:[#allocation7 + $0x1a8] sm:$0xff]
    %v205 = vld [vmem:[#allocation7 + $0x1b0] sm:$0xff]
    %v206 = vld [vmem:[#allocation7 + $0x1b8] sm:$0xff]
    %v207 = vld [vmem:[#allocation7 + $0x1c0] sm:$0xff]
    %v208 = vld [vmem:[#allocation7 + $0x1c8] sm:$0xff]
    %v209 = vld [vmem:[#allocation7 + $0x1d0] sm:$0xff]
    %v210 = vld [vmem:[#allocation7 + $0x1d8] sm:$0xff]
    %v211 = vld [vmem:[#allocation7 + $0x1e0] sm:$0xff]
    %v212 = vld [vmem:[#allocation7 + $0x1e8] sm:$0xff]
    %v213 = vld [vmem:[#allocation7 + $0x1f0] sm:$0xff]
    %v214 = vld [vmem:[#allocation7 + $0x1f8] sm:$0xff]
    %v215 = vld [vmem:[%s4] sm:$0xf]
    %v217 = vlaneseq
    %v218 = vshrl.u32 %v217, 7
    %v219 = vsub.s32 0, %v218
    %v220 = vrot.slane %v215, %v219
    %v221 = vlaneseq
    %v222 = vshrl.u32 %v221, 7
    %v223 = vsub.s32 1, %v222
    %v224 = vrot.slane %v215, %v223
    %v225 = vlaneseq
    %v226 = vshrl.u32 %v225, 7
    %v227 = vsub.s32 2, %v226
    %v228 = vrot.slane %v215, %v227
    %v229 = vlaneseq
    %v230 = vshrl.u32 %v229, 7
    %v231 = vsub.s32 3, %v230
    %v232 = vrot.slane %v215, %v231
    %v301 = vunpack.c.l.b16 %v151
    %v302 = vunpack.c.h.b16 %v151
    %v303 = vunpack.c.l.b16 %v152
    %v304 = vunpack.c.h.b16 %v152
    %v305 = vunpack.c.l.b16 %v153
    %v306 = vunpack.c.h.b16 %v153
    %v307 = vunpack.c.l.b16 %v154
    %v308 = vunpack.c.h.b16 %v154
    %v309 = vunpack.c.l.b16 %v155
    %v310 = vunpack.c.h.b16 %v155
    %v311 = vunpack.c.l.b16 %v156
    %v312 = vunpack.c.h.b16 %v156
    %v313 = vunpack.c.l.b16 %v157
    %v314 = vunpack.c.h.b16 %v157
    %v315 = vunpack.c.l.b16 %v158
    %v316 = vunpack.c.h.b16 %v158
    %v317 = vunpack.c.l.b16 %v159
    %v318 = vunpack.c.h.b16 %v159
    %v319 = vunpack.c.l.b16 %v160
    %v320 = vunpack.c.h.b16 %v160
    %v321 = vunpack.c.l.b16 %v161
    %v322 = vunpack.c.h.b16 %v161
    %v323 = vunpack.c.l.b16 %v162
    %v324 = vunpack.c.h.b16 %v162
    %v325 = vunpack.c.l.b16 %v163
    %v326 = vunpack.c.h.b16 %v163
    %v327 = vunpack.c.l.b16 %v164
    %v328 = vunpack.c.h.b16 %v164
    %v329 = vunpack.c.l.b16 %v165
    %v330 = vunpack.c.h.b16 %v165
    %v331 = vunpack.c.l.b16 %v166
    %v332 = vunpack.c.h.b16 %v166
    %v333 = vunpack.c.l.b16 %v167
    %v334 = vunpack.c.h.b16 %v167
    %v335 = vunpack.c.l.b16 %v168
    %v336 = vunpack.c.h.b16 %v168
    %v337 = vunpack.c.l.b16 %v169
    %v338 = vunpack.c.h.b16 %v169
    %v339 = vunpack.c.l.b16 %v170
    %v340 = vunpack.c.h.b16 %v170
    %v341 = vunpack.c.l.b16 %v171
    %v342 = vunpack.c.h.b16 %v171
    %v343 = vunpack.c.l.b16 %v172
    %v344 = vunpack.c.h.b16 %v172
    %v345 = vunpack.c.l.b16 %v173
    %v346 = vunpack.c.h.b16 %v173
    %v347 = vunpack.c.l.b16 %v174
    %v348 = vunpack.c.h.b16 %v174
    %v349 = vunpack.c.l.b16 %v175
    %v350 = vunpack.c.h.b16 %v175
    %v351 = vunpack.c.l.b16 %v176
    %v352 = vunpack.c.h.b16 %v176
    %v353 = vunpack.c.l.b16 %v177
    %v354 = vunpack.c.h.b16 %v177
    %v355 = vunpack.c.l.b16 %v178
    %v356 = vunpack.c.h.b16 %v178
    %v357 = vunpack.c.l.b16 %v179
    %v358 = vunpack.c.h.b16 %v179
    %v359 = vunpack.c.l.b16 %v180
    %v360 = vunpack.c.h.b16 %v180
    %v361 = vunpack.c.l.b16 %v181
    %v362 = vunpack.c.h.b16 %v181
    %v363 = vunpack.c.l.b16 %v182
    %v364 = vunpack.c.h.b16 %v182
    %v365 = vunpack.c.l.b16 %v183
    %v366 = vunpack.c.h.b16 %v183
    %v367 = vunpack.c.l.b16 %v184
    %v368 = vunpack.c.h.b16 %v184
    %v369 = vunpack.c.l.b16 %v185
    %v370 = vunpack.c.h.b16 %v185
    %v371 = vunpack.c.l.b16 %v186
    %v372 = vunpack.c.h.b16 %v186
    %v373 = vunpack.c.l.b16 %v187
    %v374 = vunpack.c.h.b16 %v187
    %v375 = vunpack.c.l.b16 %v188
    %v376 = vunpack.c.h.b16 %v188
    %v377 = vunpack.c.l.b16 %v189
    %v378 = vunpack.c.h.b16 %v189
    %v379 = vunpack.c.l.b16 %v190
    %v380 = vunpack.c.h.b16 %v190
    %v381 = vunpack.c.l.b16 %v191
    %v382 = vunpack.c.h.b16 %v191
    %v383 = vunpack.c.l.b16 %v192
    %v384 = vunpack.c.h.b16 %v192
    %v385 = vunpack.c.l.b16 %v193
    %v386 = vunpack.c.h.b16 %v193
    %v387 = vunpack.c.l.b16 %v194
    %v388 = vunpack.c.h.b16 %v194
    %v389 = vunpack.c.l.b16 %v195
    %v390 = vunpack.c.h.b16 %v195
    %v391 = vunpack.c.l.b16 %v196
    %v392 = vunpack.c.h.b16 %v196
    %v393 = vunpack.c.l.b16 %v197
    %v394 = vunpack.c.h.b16 %v197
    %v395 = vunpack.c.l.b16 %v198
    %v396 = vunpack.c.h.b16 %v198
    %v397 = vunpack.c.l.b16 %v199
    %v398 = vunpack.c.h.b16 %v199
    %v399 = vunpack.c.l.b16 %v200
    %v400 = vunpack.c.h.b16 %v200
    %v401 = vunpack.c.l.b16 %v201
    %v402 = vunpack.c.h.b16 %v201
    %v403 = vunpack.c.l.b16 %v202
    %v404 = vunpack.c.h.b16 %v202
    %v405 = vunpack.c.l.b16 %v203
    %v406 = vunpack.c.h.b16 %v203
    %v407 = vunpack.c.l.b16 %v204
    %v408 = vunpack.c.h.b16 %v204
    %v409 = vunpack.c.l.b16 %v205
    %v410 = vunpack.c.h.b16 %v205
    %v411 = vunpack.c.l.b16 %v206
    %v412 = vunpack.c.h.b16 %v206
    %v413 = vunpack.c.l.b16 %v207
    %v414 = vunpack.c.h.b16 %v207
    %v415 = vunpack.c.l.b16 %v208
    %v416 = vunpack.c.h.b16 %v208
    %v417 = vunpack.c.l.b16 %v209
    %v418 = vunpack.c.h.b16 %v209
    %v419 = vunpack.c.l.b16 %v210
    %v420 = vunpack.c.h.b16 %v210
    %v421 = vunpack.c.l.b16 %v211
    %v422 = vunpack.c.h.b16 %v211
    %v423 = vunpack.c.l.b16 %v212
    %v424 = vunpack.c.h.b16 %v212
    %v425 = vunpack.c.l.b16 %v213
    %v426 = vunpack.c.h.b16 %v213
    %v427 = vunpack.c.l.b16 %v214
    %v428 = vunpack.c.h.b16 %v214
    %v429 = vpack.c.b16 %v305, %v301
    %v430 = vpack.c.b16 %v306, %v302
    %v431 = vpack.c.b16 %v307, %v303
    %v432 = vpack.c.b16 %v308, %v304
    %v433 = vpack.c.b16 %v313, %v309
    %v434 = vpack.c.b16 %v314, %v310
    %v435 = vpack.c.b16 %v315, %v311
    %v436 = vpack.c.b16 %v316, %v312
    %v437 = vpack.c.b16 %v321, %v317
    %v438 = vpack.c.b16 %v322, %v318
    %v439 = vpack.c.b16 %v323, %v319
    %v440 = vpack.c.b16 %v324, %v320
    %v441 = vpack.c.b16 %v329, %v325
    %v442 = vpack.c.b16 %v330, %v326
    %v443 = vpack.c.b16 %v331, %v327
    %v444 = vpack.c.b16 %v332, %v328
    %v445 = vpack.c.b16 %v337, %v333
    %v446 = vpack.c.b16 %v338, %v334
    %v447 = vpack.c.b16 %v339, %v335
    %v448 = vpack.c.b16 %v340, %v336
    %v449 = vpack.c.b16 %v345, %v341
    %v450 = vpack.c.b16 %v346, %v342
    %v451 = vpack.c.b16 %v347, %v343
    %v452 = vpack.c.b16 %v348, %v344
    %v453 = vpack.c.b16 %v353, %v349
    %v454 = vpack.c.b16 %v354, %v350
    %v455 = vpack.c.b16 %v355, %v351
    %v456 = vpack.c.b16 %v356, %v352
    %v457 = vpack.c.b16 %v361, %v357
    %v458 = vpack.c.b16 %v362, %v358
    %v459 = vpack.c.b16 %v363, %v359
    %v460 = vpack.c.b16 %v364, %v360
    %v461 = vpack.c.b16 %v369, %v365
    %v462 = vpack.c.b16 %v370, %v366
    %v463 = vpack.c.b16 %v371, %v367
    %v464 = vpack.c.b16 %v372, %v368
    %v465 = vpack.c.b16 %v377, %v373
    %v466 = vpack.c.b16 %v378, %v374
    %v467 = vpack.c.b16 %v379, %v375
    %v468 = vpack.c.b16 %v380, %v376
    %v469 = vpack.c.b16 %v385, %v381
    %v470 = vpack.c.b16 %v386, %v382
    %v471 = vpack.c.b16 %v387, %v383
    %v472 = vpack.c.b16 %v388, %v384
    %v473 = vpack.c.b16 %v393, %v389
    %v474 = vpack.c.b16 %v394, %v390
    %v475 = vpack.c.b16 %v395, %v391
    %v476 = vpack.c.b16 %v396, %v392
    %v477 = vpack.c.b16 %v401, %v397
    %v478 = vpack.c.b16 %v402, %v398
    %v479 = vpack.c.b16 %v403, %v399
    %v480 = vpack.c.b16 %v404, %v400
    %v481 = vpack.c.b16 %v409, %v405
    %v482 = vpack.c.b16 %v410, %v406
    %v483 = vpack.c.b16 %v411, %v407
    %v484 = vpack.c.b16 %v412, %v408
    %v485 = vpack.c.b16 %v417, %v413
    %v486 = vpack.c.b16 %v418, %v414
    %v487 = vpack.c.b16 %v419, %v415
    %v488 = vpack.c.b16 %v420, %v416
    %v489 = vpack.c.b16 %v425, %v421
    %v490 = vpack.c.b16 %v426, %v422
    %v491 = vpack.c.b16 %v427, %v423
    %v492 = vpack.c.b16 %v428, %v424
    %557 = vmatprep.subr.bf16.mxu0 %v458
    %558 = vmatpush1.bf16.msra.mxu0 %v457
    %559 = vmatprep.subr.bf16.mxu0 %v454
    %560 = vmatpush1.bf16.msra.mxu0 %v453
    %561 = vmatprep.subr.bf16.mxu0 %v450
    %562 = vmatpush1.bf16.msra.mxu0 %v449
    %563 = vmatprep.subr.bf16.mxu0 %v446
    %564 = vmatpush1.bf16.msra.mxu0 %v445
    %565 = vmatprep.subr.bf16.mxu0 %v442
    %566 = vmatpush1.bf16.msra.mxu0 %v441
    %567 = vmatprep.subr.bf16.mxu0 %v438
    %568 = vmatpush1.bf16.msra.mxu0 %v437
    %569 = vmatprep.subr.bf16.mxu0 %v434
    %570 = vmatpush1.bf16.msra.mxu0 %v433
    %571 = vmatprep.subr.bf16.mxu0 %v430
    %572 = vmatpush1.bf16.msra.mxu0 %v429
    %573 = vmatprep.subr.bf16.mxu0 %v490
    %574 = vmatpush2.bf16.msra.mxu0 %v489
    %575 = vmatprep.subr.bf16.mxu0 %v486
    %576 = vmatpush2.bf16.msra.mxu0 %v485
    %577 = vmatprep.subr.bf16.mxu0 %v482
    %578 = vmatpush2.bf16.msra.mxu0 %v481
    %579 = vmatprep.subr.bf16.mxu0 %v478
    %580 = vmatpush2.bf16.msra.mxu0 %v477
    %581 = vmatprep.subr.bf16.mxu0 %v474
    %582 = vmatpush2.bf16.msra.mxu0 %v473
    %583 = vmatprep.subr.bf16.mxu0 %v470
    %584 = vmatpush2.bf16.msra.mxu0 %v469
    %585 = vmatprep.subr.bf16.mxu0 %v466
    %586 = vmatpush2.bf16.msra.mxu0 %v465
    %587 = vmatprep.subr.bf16.mxu0 %v462
    %588 = vmatpush2.bf16.msra.mxu0 %v461
    %589 = vmatprep.mubr.bf16.mxu0 %v150
    %590 = vmatmul.mubr.bf16.gmra.mxu0 %v149
    %v591 = vpop.f32.mrf.mxu0
    %v592 = vadd.f32 %v220, %v591
    %v593 = vpop.f32.mrf.mxu0
    %v594 = vadd.f32 %v224, %v593
    %v595 = vpop.f32.mrf.mxu0
    %v596 = vadd.f32 %v220, %v595
    %v597 = vpop.f32.mrf.mxu0
    %v598 = vadd.f32 %v224, %v597
    %599 = vdwg.mxu0
    %600 = vmatprep.subr.bf16.mxu0 %v460
    %601 = vmatpush1.bf16.msra.mxu0 %v459
    %602 = vmatprep.subr.bf16.mxu0 %v456
    %603 = vmatpush1.bf16.msra.mxu0 %v455
    %604 = vmatprep.subr.bf16.mxu0 %v452
    %605 = vmatpush1.bf16.msra.mxu0 %v451
    %606 = vmatprep.subr.bf16.mxu0 %v448
    %607 = vmatpush1.bf16.msra.mxu0 %v447
    %608 = vmatprep.subr.bf16.mxu0 %v444
    %609 = vmatpush1.bf16.msra.mxu0 %v443
    %610 = vmatprep.subr.bf16.mxu0 %v440
    %611 = vmatpush1.bf16.msra.mxu0 %v439
    %612 = vmatprep.subr.bf16.mxu0 %v436
    %613 = vmatpush1.bf16.msra.mxu0 %v435
    %614 = vmatprep.subr.bf16.mxu0 %v432
    %615 = vmatpush1.bf16.msra.mxu0 %v431
    %616 = vmatprep.subr.bf16.mxu0 %v492
    %617 = vmatpush2.bf16.msra.mxu0 %v491
    %618 = vmatprep.subr.bf16.mxu0 %v488
    %619 = vmatpush2.bf16.msra.mxu0 %v487
    %620 = vmatprep.subr.bf16.mxu0 %v484
    %621 = vmatpush2.bf16.msra.mxu0 %v483
    %622 = vmatprep.subr.bf16.mxu0 %v480
    %623 = vmatpush2.bf16.msra.mxu0 %v479
    %624 = vmatprep.subr.bf16.mxu0 %v476
    %625 = vmatpush2.bf16.msra.mxu0 %v475
    %626 = vmatprep.subr.bf16.mxu0 %v472
    %627 = vmatpush2.bf16.msra.mxu0 %v471
    %628 = vmatprep.subr.bf16.mxu0 %v468
    %629 = vmatpush2.bf16.msra.mxu0 %v467
    %630 = vmatprep.subr.bf16.mxu0 %v464
    %631 = vmatpush2.bf16.msra.mxu0 %v463
    %632 = vmatprep.mubr.bf16.mxu0 %v150
    %633 = vmatmul.mubr.bf16.gmra.mxu0 %v149
    %v634 = vpop.f32.mrf.mxu0
    %v635 = vadd.f32 %v228, %v634
    %v636 = vpop.f32.mrf.mxu0
    %v637 = vadd.f32 %v232, %v636
    %v638 = vpop.f32.mrf.mxu0
    %v639 = vadd.f32 %v228, %v638
    %v640 = vpop.f32.mrf.mxu0
    %v641 = vadd.f32 %v232, %v640
    %642 = vdwg.mxu0
    %v643 = vmax.f32 %v592, 0.0
    %v644 = vmax.f32 %v594, 0.0
    %v645 = vmax.f32 %v635, 0.0
    %v646 = vmax.f32 %v637, 0.0
    %v647 = vmax.f32 %v596, 0.0
    %v648 = vmax.f32 %v598, 0.0
    %v649 = vmax.f32 %v639, 0.0
    %v650 = vmax.f32 %v641, 0.0
    %v651 = vpack.c.bf16 %v647, %v643
    %v652 = vpack.c.bf16 %v648, %v644
    %v653 = vpack.c.bf16 %v649, %v645
    %v654 = vpack.c.bf16 %v650, %v646
    %v655 = vld [vmem:[#allocation8] sm:$0xff]
    %v656 = vld [vmem:[#allocation8 + $0x8] sm:$0xff]
    %v657 = vld [vmem:[#allocation8 + $0x10] sm:$0xff]
    %v658 = vld [vmem:[#allocation8 + $0x18] sm:$0xff]
    %v659 = vld [vmem:[#allocation8 + $0x20] sm:$0xff]
    %v660 = vld [vmem:[#allocation8 + $0x28] sm:$0xff]
    %v661 = vld [vmem:[#allocation8 + $0x30] sm:$0xff]
    %v662 = vld [vmem:[#allocation8 + $0x38] sm:$0xff]
    %v663 = vld [vmem:[#allocation8 + $0x40] sm:$0xff]
    %v664 = vld [vmem:[#allocation8 + $0x48] sm:$0xff]
    %v665 = vld [vmem:[#allocation8 + $0x50] sm:$0xff]
    %v666 = vld [vmem:[#allocation8 + $0x58] sm:$0xff]
    %v667 = vld [vmem:[#allocation8 + $0x60] sm:$0xff]
    %v668 = vld [vmem:[#allocation8 + $0x68] sm:$0xff]
    %v669 = vld [vmem:[#allocation8 + $0x70] sm:$0xff]
    %v670 = vld [vmem:[#allocation8 + $0x78] sm:$0xff]
    %v671 = vld [vmem:[#allocation8 + $0x80] sm:$0xff]
    %v672 = vld [vmem:[#allocation8 + $0x88] sm:$0xff]
    %v673 = vld [vmem:[#allocation8 + $0x90] sm:$0xff]
    %v674 = vld [vmem:[#allocation8 + $0x98] sm:$0xff]
    %v675 = vld [vmem:[#allocation8 + $0xa0] sm:$0xff]
    %v676 = vld [vmem:[#allocation8 + $0xa8] sm:$0xff]
    %v677 = vld [vmem:[#allocation8 + $0xb0] sm:$0xff]
    %v678 = vld [vmem:[#allocation8 + $0xb8] sm:$0xff]
    %v679 = vld [vmem:[#allocation8 + $0xc0] sm:$0xff]
    %v680 = vld [vmem:[#allocation8 + $0xc8] sm:$0xff]
    %v681 = vld [vmem:[#allocation8 + $0xd0] sm:$0xff]
    %v682 = vld [vmem:[#allocation8 + $0xd8] sm:$0xff]
    %v683 = vld [vmem:[#allocation8 + $0xe0] sm:$0xff]
    %v684 = vld [vmem:[#allocation8 + $0xe8] sm:$0xff]
    %v685 = vld [vmem:[#allocation8 + $0xf0] sm:$0xff]
    %v686 = vld [vmem:[#allocation8 + $0xf8] sm:$0xff]
    %v687 = vld [vmem:[#allocation8 + $0x100] sm:$0xff]
    %v688 = vld [vmem:[#allocation8 + $0x108] sm:$0xff]
    %v689 = vld [vmem:[#allocation8 + $0x110] sm:$0xff]
    %v690 = vld [vmem:[#allocation8 + $0x118] sm:$0xff]
    %v691 = vld [vmem:[#allocation8 + $0x120] sm:$0xff]
    %v692 = vld [vmem:[#allocation8 + $0x128] sm:$0xff]
    %v693 = vld [vmem:[#allocation8 + $0x130] sm:$0xff]
    %v694 = vld [vmem:[#allocation8 + $0x138] sm:$0xff]
    %v695 = vld [vmem:[#allocation8 + $0x140] sm:$0xff]
    %v696 = vld [vmem:[#allocation8 + $0x148] sm:$0xff]
    %v697 = vld [vmem:[#allocation8 + $0x150] sm:$0xff]
    %v698 = vld [vmem:[#allocation8 + $0x158] sm:$0xff]
    %v699 = vld [vmem:[#allocation8 + $0x160] sm:$0xff]
    %v700 = vld [vmem:[#allocation8 + $0x168] sm:$0xff]
    %v701 = vld [vmem:[#allocation8 + $0x170] sm:$0xff]
    %v702 = vld [vmem:[#allocation8 + $0x178] sm:$0xff]
    %v703 = vld [vmem:[#allocation8 + $0x180] sm:$0xff]
    %v704 = vld [vmem:[#allocation8 + $0x188] sm:$0xff]
    %v705 = vld [vmem:[#allocation8 + $0x190] sm:$0xff]
    %v706 = vld [vmem:[#allocation8 + $0x198] sm:$0xff]
    %v707 = vld [vmem:[#allocation8 + $0x1a0] sm:$0xff]
    %v708 = vld [vmem:[#allocation8 + $0x1a8] sm:$0xff]
    %v709 = vld [vmem:[#allocation8 + $0x1b0] sm:$0xff]
    %v710 = vld [vmem:[#allocation8 + $0x1b8] sm:$0xff]
    %v711 = vld [vmem:[#allocation8 + $0x1c0] sm:$0xff]
    %v712 = vld [vmem:[#allocation8 + $0x1c8] sm:$0xff]
    %v713 = vld [vmem:[#allocation8 + $0x1d0] sm:$0xff]
    %v714 = vld [vmem:[#allocation8 + $0x1d8] sm:$0xff]
    %v715 = vld [vmem:[#allocation8 + $0x1e0] sm:$0xff]
    %v716 = vld [vmem:[#allocation8 + $0x1e8] sm:$0xff]
    %v717 = vld [vmem:[#allocation8 + $0x1f0] sm:$0xff]
    %v718 = vld [vmem:[#allocation8 + $0x1f8] sm:$0xff]
    %v719 = vld [vmem:[%s6] sm:$0x3]
    %v721 = vlaneseq
    %v722 = vshrl.u32 %v721, 7
    %v723 = vsub.s32 0, %v722
    %v724 = vrot.slane %v719, %v723
    %v725 = vlaneseq
    %v726 = vshrl.u32 %v725, 7
    %v727 = vsub.s32 1, %v726
    %v728 = vrot.slane %v719, %v727
    %v795 = vunpack.c.l.b16 %v655
    %v796 = vunpack.c.h.b16 %v655
    %v797 = vunpack.c.l.b16 %v656
    %v798 = vunpack.c.h.b16 %v656
    %v799 = vunpack.c.l.b16 %v657
    %v800 = vunpack.c.h.b16 %v657
    %v801 = vunpack.c.l.b16 %v658
    %v802 = vunpack.c.h.b16 %v658
    %v803 = vunpack.c.l.b16 %v659
    %v804 = vunpack.c.h.b16 %v659
    %v805 = vunpack.c.l.b16 %v660
    %v806 = vunpack.c.h.b16 %v660
    %v807 = vunpack.c.l.b16 %v661
    %v808 = vunpack.c.h.b16 %v661
    %v809 = vunpack.c.l.b16 %v662
    %v810 = vunpack.c.h.b16 %v662
    %v811 = vunpack.c.l.b16 %v663
    %v812 = vunpack.c.h.b16 %v663
    %v813 = vunpack.c.l.b16 %v664
    %v814 = vunpack.c.h.b16 %v664
    %v815 = vunpack.c.l.b16 %v665
    %v816 = vunpack.c.h.b16 %v665
    %v817 = vunpack.c.l.b16 %v666
    %v818 = vunpack.c.h.b16 %v666
    %v819 = vunpack.c.l.b16 %v667
    %v820 = vunpack.c.h.b16 %v667
    %v821 = vunpack.c.l.b16 %v668
    %v822 = vunpack.c.h.b16 %v668
    %v823 = vunpack.c.l.b16 %v669
    %v824 = vunpack.c.h.b16 %v669
    %v825 = vunpack.c.l.b16 %v670
    %v826 = vunpack.c.h.b16 %v670
    %v827 = vunpack.c.l.b16 %v671
    %v828 = vunpack.c.h.b16 %v671
    %v829 = vunpack.c.l.b16 %v672
    %v830 = vunpack.c.h.b16 %v672
    %v831 = vunpack.c.l.b16 %v673
    %v832 = vunpack.c.h.b16 %v673
    %v833 = vunpack.c.l.b16 %v674
    %v834 = vunpack.c.h.b16 %v674
    %v835 = vunpack.c.l.b16 %v675
    %v836 = vunpack.c.h.b16 %v675
    %v837 = vunpack.c.l.b16 %v676
    %v838 = vunpack.c.h.b16 %v676
    %v839 = vunpack.c.l.b16 %v677
    %v840 = vunpack.c.h.b16 %v677
    %v841 = vunpack.c.l.b16 %v678
    %v842 = vunpack.c.h.b16 %v678
    %v843 = vunpack.c.l.b16 %v679
    %v844 = vunpack.c.h.b16 %v679
    %v845 = vunpack.c.l.b16 %v680
    %v846 = vunpack.c.h.b16 %v680
    %v847 = vunpack.c.l.b16 %v681
    %v848 = vunpack.c.h.b16 %v681
    %v849 = vunpack.c.l.b16 %v682
    %v850 = vunpack.c.h.b16 %v682
    %v851 = vunpack.c.l.b16 %v683
    %v852 = vunpack.c.h.b16 %v683
    %v853 = vunpack.c.l.b16 %v684
    %v854 = vunpack.c.h.b16 %v684
    %v855 = vunpack.c.l.b16 %v685
    %v856 = vunpack.c.h.b16 %v685
    %v857 = vunpack.c.l.b16 %v686
    %v858 = vunpack.c.h.b16 %v686
    %v859 = vunpack.c.l.b16 %v687
    %v860 = vunpack.c.h.b16 %v687
    %v861 = vunpack.c.l.b16 %v688
    %v862 = vunpack.c.h.b16 %v688
    %v863 = vunpack.c.l.b16 %v689
    %v864 = vunpack.c.h.b16 %v689
    %v865 = vunpack.c.l.b16 %v690
    %v866 = vunpack.c.h.b16 %v690
    %v867 = vunpack.c.l.b16 %v691
    %v868 = vunpack.c.h.b16 %v691
    %v869 = vunpack.c.l.b16 %v692
    %v870 = vunpack.c.h.b16 %v692
    %v871 = vunpack.c.l.b16 %v693
    %v872 = vunpack.c.h.b16 %v693
    %v873 = vunpack.c.l.b16 %v694
    %v874 = vunpack.c.h.b16 %v694
    %v875 = vunpack.c.l.b16 %v695
    %v876 = vunpack.c.h.b16 %v695
    %v877 = vunpack.c.l.b16 %v696
    %v878 = vunpack.c.h.b16 %v696
    %v879 = vunpack.c.l.b16 %v697
    %v880 = vunpack.c.h.b16 %v697
    %v881 = vunpack.c.l.b16 %v698
    %v882 = vunpack.c.h.b16 %v698
    %v883 = vunpack.c.l.b16 %v699
    %v884 = vunpack.c.h.b16 %v699
    %v885 = vunpack.c.l.b16 %v700
    %v886 = vunpack.c.h.b16 %v700
    %v887 = vunpack.c.l.b16 %v701
    %v888 = vunpack.c.h.b16 %v701
    %v889 = vunpack.c.l.b16 %v702
    %v890 = vunpack.c.h.b16 %v702
    %v891 = vunpack.c.l.b16 %v703
    %v892 = vunpack.c.h.b16 %v703
    %v893 = vunpack.c.l.b16 %v704
    %v894 = vunpack.c.h.b16 %v704
    %v895 = vunpack.c.l.b16 %v705
    %v896 = vunpack.c.h.b16 %v705
    %v897 = vunpack.c.l.b16 %v706
    %v898 = vunpack.c.h.b16 %v706
    %v899 = vunpack.c.l.b16 %v707
    %v900 = vunpack.c.h.b16 %v707
    %v901 = vunpack.c.l.b16 %v708
    %v902 = vunpack.c.h.b16 %v708
    %v903 = vunpack.c.l.b16 %v709
    %v904 = vunpack.c.h.b16 %v709
    %v905 = vunpack.c.l.b16 %v710
    %v906 = vunpack.c.h.b16 %v710
    %v907 = vunpack.c.l.b16 %v711
    %v908 = vunpack.c.h.b16 %v711
    %v909 = vunpack.c.l.b16 %v712
    %v910 = vunpack.c.h.b16 %v712
    %v911 = vunpack.c.l.b16 %v713
    %v912 = vunpack.c.h.b16 %v713
    %v913 = vunpack.c.l.b16 %v714
    %v914 = vunpack.c.h.b16 %v714
    %v915 = vunpack.c.l.b16 %v715
    %v916 = vunpack.c.h.b16 %v715
    %v917 = vunpack.c.l.b16 %v716
    %v918 = vunpack.c.h.b16 %v716
    %v919 = vunpack.c.l.b16 %v717
    %v920 = vunpack.c.h.b16 %v717
    %v921 = vunpack.c.l.b16 %v718
    %v922 = vunpack.c.h.b16 %v718
    %v923 = vpack.c.b16 %v797, %v795
    %v924 = vpack.c.b16 %v798, %v796
    %v925 = vpack.c.b16 %v801, %v799
    %v926 = vpack.c.b16 %v802, %v800
    %v927 = vpack.c.b16 %v805, %v803
    %v928 = vpack.c.b16 %v806, %v804
    %v929 = vpack.c.b16 %v809, %v807
    %v930 = vpack.c.b16 %v810, %v808
    %v931 = vpack.c.b16 %v813, %v811
    %v932 = vpack.c.b16 %v814, %v812
    %v933 = vpack.c.b16 %v817, %v815
    %v934 = vpack.c.b16 %v818, %v816
    %v935 = vpack.c.b16 %v821, %v819
    %v936 = vpack.c.b16 %v822, %v820
    %v937 = vpack.c.b16 %v825, %v823
    %v938 = vpack.c.b16 %v826, %v824
    %v939 = vpack.c.b16 %v829, %v827
    %v940 = vpack.c.b16 %v830, %v828
    %v941 = vpack.c.b16 %v833, %v831
    %v942 = vpack.c.b16 %v834, %v832
    %v943 = vpack.c.b16 %v837, %v835
    %v944 = vpack.c.b16 %v838, %v836
    %v945 = vpack.c.b16 %v841, %v839
    %v946 = vpack.c.b16 %v842, %v840
    %v947 = vpack.c.b16 %v845, %v843
    %v948 = vpack.c.b16 %v846, %v844
    %v949 = vpack.c.b16 %v849, %v847
    %v950 = vpack.c.b16 %v850, %v848
    %v951 = vpack.c.b16 %v853, %v851
    %v952 = vpack.c.b16 %v854, %v852
    %v953 = vpack.c.b16 %v857, %v855
    %v954 = vpack.c.b16 %v858, %v856
    %v955 = vpack.c.b16 %v861, %v859
    %v956 = vpack.c.b16 %v862, %v860
    %v957 = vpack.c.b16 %v865, %v863
    %v958 = vpack.c.b16 %v866, %v864
    %v959 = vpack.c.b16 %v869, %v867
    %v960 = vpack.c.b16 %v870, %v868
    %v961 = vpack.c.b16 %v873, %v871
    %v962 = vpack.c.b16 %v874, %v872
    %v963 = vpack.c.b16 %v877, %v875
    %v964 = vpack.c.b16 %v878, %v876
    %v965 = vpack.c.b16 %v881, %v879
    %v966 = vpack.c.b16 %v882, %v880
    %v967 = vpack.c.b16 %v885, %v883
    %v968 = vpack.c.b16 %v886, %v884
    %v969 = vpack.c.b16 %v889, %v887
    %v970 = vpack.c.b16 %v890, %v888
    %v971 = vpack.c.b16 %v893, %v891
    %v972 = vpack.c.b16 %v894, %v892
    %v973 = vpack.c.b16 %v897, %v895
    %v974 = vpack.c.b16 %v898, %v896
    %v975 = vpack.c.b16 %v901, %v899
    %v976 = vpack.c.b16 %v902, %v900
    %v977 = vpack.c.b16 %v905, %v903
    %v978 = vpack.c.b16 %v906, %v904
    %v979 = vpack.c.b16 %v909, %v907
    %v980 = vpack.c.b16 %v910, %v908
    %v981 = vpack.c.b16 %v913, %v911
    %v982 = vpack.c.b16 %v914, %v912
    %v983 = vpack.c.b16 %v917, %v915
    %v984 = vpack.c.b16 %v918, %v916
    %v985 = vpack.c.b16 %v921, %v919
    %v986 = vpack.c.b16 %v922, %v920
    %1051 = vmatprep.subr.bf16.mxu0 %v938
    %1052 = vmatpush1.bf16.msra.mxu0 %v937
    %1053 = vmatprep.subr.bf16.mxu0 %v936
    %1054 = vmatpush1.bf16.msra.mxu0 %v935
    %1055 = vmatprep.subr.bf16.mxu0 %v934
    %1056 = vmatpush1.bf16.msra.mxu0 %v933
    %1057 = vmatprep.subr.bf16.mxu0 %v932
    %1058 = vmatpush1.bf16.msra.mxu0 %v931
    %1059 = vmatprep.subr.bf16.mxu0 %v930
    %1060 = vmatpush1.bf16.msra.mxu0 %v929
    %1061 = vmatprep.subr.bf16.mxu0 %v928
    %1062 = vmatpush1.bf16.msra.mxu0 %v927
    %1063 = vmatprep.subr.bf16.mxu0 %v926
    %1064 = vmatpush1.bf16.msra.mxu0 %v925
    %1065 = vmatprep.subr.bf16.mxu0 %v924
    %1066 = vmatpush1.bf16.msra.mxu0 %v923
    %1067 = vmatprep.subr.bf16.mxu0 %v954
    %1068 = vmatpush2.bf16.msra.mxu0 %v953
    %1069 = vmatprep.subr.bf16.mxu0 %v952
    %1070 = vmatpush2.bf16.msra.mxu0 %v951
    %1071 = vmatprep.subr.bf16.mxu0 %v950
    %1072 = vmatpush2.bf16.msra.mxu0 %v949
    %1073 = vmatprep.subr.bf16.mxu0 %v948
    %1074 = vmatpush2.bf16.msra.mxu0 %v947
    %1075 = vmatprep.subr.bf16.mxu0 %v946
    %1076 = vmatpush2.bf16.msra.mxu0 %v945
    %1077 = vmatprep.subr.bf16.mxu0 %v944
    %1078 = vmatpush2.bf16.msra.mxu0 %v943
    %1079 = vmatprep.subr.bf16.mxu0 %v942
    %1080 = vmatpush2.bf16.msra.mxu0 %v941
    %1081 = vmatprep.subr.bf16.mxu0 %v940
    %1082 = vmatpush2.bf16.msra.mxu0 %v939
    %1083 = vmatprep.mubr.bf16.mxu0 %v652
    %1084 = vmatmul.mubr.bf16.gmra.mxu0 %v651
    %v1085 = vpop.f32.mrf.mxu0
    %v1086 = vadd.f32 %v724, %v1085
    %v1087 = vpop.f32.mrf.mxu0
    %v1088 = vadd.f32 %v728, %v1087
    %v1089 = vpop.f32.mrf.mxu0
    %v1090 = vadd.f32 %v724, %v1089
    %v1091 = vpop.f32.mrf.mxu0
    %v1092 = vadd.f32 %v728, %v1091
    %1093 = vdwg.mxu0
    %1094 = vmatprep.subr.bf16.mxu0 %v970
    %1095 = vmatpush1.bf16.msra.mxu0 %v969
    %1096 = vmatprep.subr.bf16.mxu0 %v968
    %1097 = vmatpush1.bf16.msra.mxu0 %v967
    %1098 = vmatprep.subr.bf16.mxu0 %v966
    %1099 = vmatpush1.bf16.msra.mxu0 %v965
    %1100 = vmatprep.subr.bf16.mxu0 %v964
    %1101 = vmatpush1.bf16.msra.mxu0 %v963
    %1102 = vmatprep.subr.bf16.mxu0 %v962
    %1103 = vmatpush1.bf16.msra.mxu0 %v961
    %1104 = vmatprep.subr.bf16.mxu0 %v960
    %1105 = vmatpush1.bf16.msra.mxu0 %v959
    %1106 = vmatprep.subr.bf16.mxu0 %v958
    %1107 = vmatpush1.bf16.msra.mxu0 %v957
    %1108 = vmatprep.subr.bf16.mxu0 %v956
    %1109 = vmatpush1.bf16.msra.mxu0 %v955
    %1110 = vmatprep.subr.bf16.mxu0 %v986
    %1111 = vmatpush2.bf16.msra.mxu0 %v985
    %1112 = vmatprep.subr.bf16.mxu0 %v984
    %1113 = vmatpush2.bf16.msra.mxu0 %v983
    %1114 = vmatprep.subr.bf16.mxu0 %v982
    %1115 = vmatpush2.bf16.msra.mxu0 %v981
    %1116 = vmatprep.subr.bf16.mxu0 %v980
    %1117 = vmatpush2.bf16.msra.mxu0 %v979
    %1118 = vmatprep.subr.bf16.mxu0 %v978
    %1119 = vmatpush2.bf16.msra.mxu0 %v977
    %1120 = vmatprep.subr.bf16.mxu0 %v976
    %1121 = vmatpush2.bf16.msra.mxu0 %v975
    %1122 = vmatprep.subr.bf16.mxu0 %v974
    %1123 = vmatpush2.bf16.msra.mxu0 %v973
    %1124 = vmatprep.subr.bf16.mxu0 %v972
    %1125 = vmatpush2.bf16.msra.mxu0 %v971
    %1126 = vmatprep.mubr.bf16.mxu0 %v654
    %1127 = vmatmul.mubr.bf16.gmra.mxu0 %v653
    %v1128 = vpop.f32.mrf.mxu0
    %v1129 = vadd.f32 %v1086, %v1128
    %v1130 = vpop.f32.mrf.mxu0
    %v1131 = vadd.f32 %v1088, %v1130
    %v1132 = vpop.f32.mrf.mxu0
    %v1133 = vadd.f32 %v1090, %v1132
    %v1134 = vpop.f32.mrf.mxu0
    %v1135 = vadd.f32 %v1092, %v1134
    %1136 = vdwg.mxu0
    %1137 = vst [vmem:[#allocation10] sm:$0xff] %v1129
    %1138 = vst [vmem:[#allocation10 + $0x8] sm:$0xff] %v1131
    %1139 = vst [vmem:[#allocation10 + $0x10] sm:$0xff] %v1133
    %1140 = vst [vmem:[#allocation10 + $0x18] sm:$0xff] %v1135
    // Predicated region
    $region46: #{tpu_custom_call.1} parent=1 // pred_check
      _
    $region47: #{tpu_custom_call.1} parent=1 // pred_check_branch
      %1142 = sbr.rel (0) target = $region49
    $region48: #{tpu_custom_call.1} parent=1 // pred_region
      %s1144 = ssub.s32 512, 512
      %1145 = vsyncadd [#allocation4], %s1144
      %s1146 = sshll.u32 [#allocation10], 4
      %s1147 = int_to_ptr.vmem [resolvable:$true] %s1146
      %1152 = dma.vmem_to_hbm [thread:$0]  %s1147, 512, %s7, [#allocation4], 256, 256, 16
    $region49: #{tpu_custom_call.1} parent=1 // pred_fallthru
      _
    // Predicated region
    $region50: #{tpu_custom_call.1} parent=1 // pred_check
      _
    $region51: #{tpu_custom_call.1} parent=1 // pred_check_branch
      %1154 = sbr.rel (0) target = $region53
    $region52: #{tpu_custom_call.1} parent=1 // pred_region
      %1155 = dma.done [#allocation4], 512
    $region53: #{tpu_custom_call.1} parent=1 // pred_fallthru
      _
    %1156 = vsyncpa [#allocation3], 1
    %1157 = vsyncpa [#allocation6], 1
    %1158 = vsyncpa [#allocation9], 1
    %1159 = vsyncpa [#allocation4], 1

</llo_original>
